<compile_context>
chip_gen: v5e
topology: v5e:2x2
jax: 0.10.0
libtpu: 0.0.40
codegen_flags: <defaults>
</compile_context>

<pallas_src>
import functools
import numpy as np
import jax
import jax.numpy as jnp
from jax.experimental import pallas as pl
from jax.experimental.pallas import tpu as pltpu

EPS = float(np.finfo(np.float32).eps)  # == torch.finfo(torch.float).eps


def _round_up(x, m):
    return ((x + m - 1) // m) * m


# ----------------------- deterministic parameter setup -----------------------
def generate_stft_forward_weight(win_len, n_fft, win_type="hamming"):
    win_len = n_fft if win_len is None else win_len
    fourier_basis = np.fft.fft(np.eye(n_fft))
    cutoff = int(n_fft / 2 + 1)
    fourier_basis = np.vstack(
        [np.real(fourier_basis[:cutoff, :]), np.imag(fourier_basis[:cutoff, :])]
    ).astype(np.float32)
    forward_weight = fourier_basis[:, None, :]  # (2*cutoff, 1, n_fft)
    if win_type == "hamming":
        # torch.hamming_window default is periodic=True, alpha=0.54, beta=0.46
        n = np.arange(win_len, dtype=np.float64)
        fft_window = (0.54 - 0.46 * np.cos(2.0 * np.pi * n / win_len)).astype(np.float32)
    else:
        raise NotImplementedError("unknown win_type")
    fft_window = np.concatenate(
        [np.zeros(n_fft - win_len, dtype=np.float32), fft_window], axis=0
    )
    return (forward_weight * fft_window).astype(np.float32)


def generate_mel_filter_banks(num_mel_bins=40, num_fft_bins=400, sample_freq=16000,
                              low_freq=0, high_freq=8000, norm="slaney"):
    # vtln=False path of the reference implementation
    all_freqs = np.linspace(0, sample_freq // 2, num_fft_bins // 2 + 1)
    m_min = 2595.0 * np.log10(1.0 + low_freq / 700.0)
    m_max = 2595.0 * np.log10(1.0 + high_freq / 700.0)
    m_pts = np.linspace(m_min, m_max, num_mel_bins + 2)
    f_pts = 700.0 * (10.0 ** (m_pts / 2595.0) - 1.0)
    f_diff = f_pts[1:] - f_pts[:-1]
    slopes = f_pts[None, :] - all_freqs[:, None]
    down_slopes = -1.0 * slopes[:, :-2] / f_diff[:-1]
    up_slopes = slopes[:, 2:] / f_diff[1:]
    fb = np.maximum(0.0, np.minimum(down_slopes, up_slopes))
    if norm is not None and norm == "slaney":
        enorm = 2.0 / (f_pts[2:num_mel_bins + 2] - f_pts[:num_mel_bins])
        fb = fb * enorm[None, :]
    return fb.T.astype(np.float32)  # (n_mels, cutoff)


# --------------------------------- Pallas kernel ------------------------------
def _fbank_kernel(frames_ref, w_ref, mel_ref, out_ref, *, cpad):
    f = frames_ref[...]                                                    # (TM, n_fft)
    # Fused STFT matmul: real and imaginary bases live in one weight, so the
    # frames tile is read once and the MXU gets a single large pass.
    y = jnp.dot(f, w_ref[...], preferred_element_type=jnp.float32)        # (TM, 2*cpad)
    re = y[:, :cpad]                                                       # lane-aligned slice
    im = y[:, cpad:]
    # 1/n_fft is already folded into the weights (scaled by 1/sqrt(n_fft)).
    power = re * re + im * im                                              # (TM, cpad)
    fb = jnp.dot(power, mel_ref[...], preferred_element_type=jnp.float32)  # (TM, Mpad)
    out_ref[...] = (20.0 / float(np.log(10.0))) * jnp.log(fb + EPS)        # 20*log10(.+eps)


# --------------------------------- module wrapper -----------------------------
class FilterBankCNNPallas:
    def __init__(self, n_fft=512, hop_length=160, win_type="hamming", win_length=None,
                 f_min=0, f_max=8000, n_mels=40, sample_rate=16000, norm="slaney",
                 preemphasis_coefficient=0.97):
        # TODO(synk): cmvn branch (mean/std from a .pt file) is a checkpoint load; omitted.
        self.n_fft = n_fft
        self.hop_length = hop_length
        self.pre = preemphasis_coefficient
        self.cutoff = int(n_fft / 2 + 1)
        self.n_mels = n_mels

        w = generate_stft_forward_weight(win_length, n_fft, win_type)      # (2*cutoff,1,n_fft)
        mel = generate_mel_filter_banks(n_mels, n_fft, sample_rate,
                                        f_min, f_max, norm)                # (n_mels, cutoff)

        # Pad the frequency (cutoff) and mel axes up to lane multiples of 128;
        # zero padding is exact (padded freq bins contribute 0 power, padded
        # mel rows are 0, padded mel columns are sliced off afterwards).
        cpad = _round_up(self.cutoff, 128)
        mpad = _round_up(n_mels, 128)

        # Fused [Wr | Wi] weight, with the 1/n_fft power normalization folded
        # in via a 1/sqrt(n_fft) scale on both halves.
        scale = np.float32(1.0 / np.sqrt(n_fft))
        w_comb = np.zeros((n_fft, 2 * cpad), np.float32)
        w_comb[:, :self.cutoff] = w[:self.cutoff, 0, :].T * scale          # real basis
        w_comb[:, cpad:cpad + self.cutoff] = w[self.cutoff:, 0, :].T * scale  # imag basis

        mel_t = np.zeros((cpad, mpad), np.float32)
        mel_t[:self.cutoff, :n_mels] = mel.T

        self.w_comb = jnp.asarray(w_comb)
        self.mel_t = jnp.asarray(mel_t)
        self.cpad = cpad
        self.mpad = mpad

    def __call__(self, x, length=None):
        B, T = x.shape
        if length is not None:
            length = jnp.ceil(length / self.hop_length).astype(jnp.int32)

        # pre-emphasis
        emph = jnp.concatenate([x[:, :1], x[:, 1:] - self.pre * x[:, :-1]], axis=-1)

        # padding (matches nf.pad(pad=[left, right]))
        left = self.n_fft - self.hop_length
        right = 0 if T % self.hop_length == 0 else self.hop_length - T % self.hop_length
        padded = jnp.pad(emph, ((0, 0), (left, right)))
        L = T + left + right
        num_frames = (L - self.n_fft) // self.hop_length + 1

        # Frame the signal (== strided conv1d receptive fields), glued in JAX.
        # TODO(synk): framing could be moved in-kernel (memory_space=pl.ANY +
        # manual DMA of each hop-strided span) to avoid the ~3.2x materialized
        # frames array in HBM; kept host-side here since hop=160 is not
        # lane-aligned and the kernel is MXU-bound after the tile fix.
        idx = (np.arange(num_frames)[:, None] * self.hop_length
               + np.arange(self.n_fft)[None, :])
        frames = padded[:, idx].reshape(B * num_frames, self.n_fft)

        n_rows = B * num_frames
        # Large row tile: fills the MXU M dimension (256 on v6e/v7x, 128 on
        # v5e) and amortizes the ~0.35us per-grid-step overhead. For tiny
        # inputs, shrink the tile so we don't pad hundreds of dead rows.
        TM = 512 if n_rows >= 512 else _round_up(n_rows, 8)
        n_rows_pad = _round_up(n_rows, TM)
        frames = jnp.pad(frames, ((0, n_rows_pad - n_rows), (0, 0)))

        # VMEM budget at TM=512 (f32): frames 1 MiB + out 0.25 MiB + weights
        # ~1.7 MiB (each double-buffered) + ~2-3 MiB of re/im/power scratch
        # -> ~10-12 MiB, within all generations once the limit is >= 32 MiB.
        out = pl.pallas_call(
            functools.partial(_fbank_kernel, cpad=self.cpad),
            out_shape=jax.ShapeDtypeStruct((n_rows_pad, self.mpad), jnp.float32),
            grid=(n_rows_pad // TM,),
            in_specs=[
                pl.BlockSpec((TM, self.n_fft), lambda i: (i, 0)),
                pl.BlockSpec((self.n_fft, 2 * self.cpad), lambda i: (0, 0)),
                pl.BlockSpec((self.cpad, self.mpad), lambda i: (0, 0)),
            ],
            out_specs=pl.BlockSpec((TM, self.mpad), lambda i: (i, 0)),
            compiler_params=pltpu.CompilerParams(
                dimension_semantics=("parallel",),
                vmem_limit_bytes=32 * 1024 * 1024,
            ),
        )(frames, self.w_comb, self.mel_t)

        fbank = out[:n_rows, :self.n_mels].reshape(B, num_frames, self.n_mels)
        fbank = jnp.transpose(fbank, (0, 2, 1))  # (B, n_mels, num_frames) == torch layout
        return fbank, length


# ------------------------------------- main -----------------------------------
if __name__ == "__main__":
    key = jax.random.PRNGKey(0)
    B, T = 2, 800  # small waveform: 5 frames at hop=160, n_fft=512
    x = jax.random.normal(key, (B, T), dtype=jnp.float32)
    length = jnp.array([800.0, 640.0], dtype=jnp.float32)

    model = FilterBankCNNPallas()
    fbank, out_len = model(x, length)
    fbank = jax.block_until_ready(fbank)
    out_len = jax.block_until_ready(out_len)

    assert fbank.shape == (B, 40, 5), fbank.shape
    assert jnp.all(jnp.isfinite(fbank))
    assert out_len.shape == (B,)
    print("KERNEL_OK")
</pallas_src>

<mosaic_0001>
module attributes {stable_mosaic.version = 11 : i64} {
  func.func @_fbank_kernel(%arg0: i32, %arg1: memref<16x512xf32, #tpu.memory_space<vmem>>, %arg2: memref<512x768xf32, #tpu.memory_space<vmem>>, %arg3: memref<384x128xf32, #tpu.memory_space<vmem>>, %arg4: memref<16x128xf32, #tpu.memory_space<vmem>>) attributes {dimension_semantics = [#tpu.dimension_semantics<parallel>], iteration_bounds = array<i64: 1>, scalar_prefetch = 0 : i64, scratch_operands = 0 : i64, tpu.core_type = #tpu.core_type<tc>, window_params = [{transform_indices = @transform_0, window_bounds = array<i64: 16, 512>}, {pipeline_mode = #tpu.pipeline_mode<synchronous>, transform_indices = @transform_1, window_bounds = array<i64: 512, 768>}, {pipeline_mode = #tpu.pipeline_mode<synchronous>, transform_indices = @transform_2, window_bounds = array<i64: 384, 128>}, {transform_indices = @transform_3, window_bounds = array<i64: 16, 128>}]} {
    %c0 = arith.constant 0 : index
    %c0_0 = arith.constant 0 : index
    %0 = vector.load %arg1[%c0, %c0_0] : memref<16x512xf32, #tpu.memory_space<vmem>>, vector<16x512xf32>
    %c0_1 = arith.constant 0 : index
    %c0_2 = arith.constant 0 : index
    %1 = vector.load %arg2[%c0_1, %c0_2] : memref<512x768xf32, #tpu.memory_space<vmem>>, vector<512x768xf32>
    %cst = arith.constant dense<0.000000e+00> : vector<16x768xf32>
    %2 = tpu.matmul %0, %1, %cst {dimension_numbers = #tpu.dot_dimension_numbers<[1], [0], [0], [1], [0, 0, 1, 1], [], []>} : vector<16x512xf32>, vector<512x768xf32>, vector<16x768xf32> -> vector<16x768xf32>
    %3 = vector.extract_strided_slice %2 {offsets = [0, 0], sizes = [16, 384], strides = [1, 1]} : vector<16x768xf32> to vector<16x384xf32>
    %4 = vector.extract_strided_slice %2 {offsets = [0, 384], sizes = [16, 384], strides = [1, 1]} : vector<16x768xf32> to vector<16x384xf32>
    %5 = arith.mulf %3, %3 : vector<16x384xf32>
    %6 = arith.mulf %4, %4 : vector<16x384xf32>
    %7 = arith.addf %5, %6 : vector<16x384xf32>
    %c0_3 = arith.constant 0 : index
    %c0_4 = arith.constant 0 : index
    %8 = vector.load %arg3[%c0_3, %c0_4] : memref<384x128xf32, #tpu.memory_space<vmem>>, vector<384x128xf32>
    %cst_5 = arith.constant dense<0.000000e+00> : vector<16x128xf32>
    %9 = tpu.matmul %7, %8, %cst_5 {dimension_numbers = #tpu.dot_dimension_numbers<[1], [0], [0], [1], [0, 0, 1, 1], [], []>} : vector<16x384xf32>, vector<384x128xf32>, vector<16x128xf32> -> vector<16x128xf32>
    %cst_6 = arith.constant 1.1920929E-7 : f32
    %10 = vector.broadcast %cst_6 : f32 to vector<16x128xf32>
    %11 = arith.addf %9, %10 : vector<16x128xf32>
    %12 = math.log %11 : vector<16x128xf32>
    %cst_7 = arith.constant 8.68588924 : f32
    %13 = vector.broadcast %cst_7 : f32 to vector<16x128xf32>
    %14 = arith.mulf %13, %12 : vector<16x128xf32>
    %c0_8 = arith.constant 0 : index
    %c0_9 = arith.constant 0 : index
    %15 = vector.load %arg4[%c0_8, %c0_9] : memref<16x128xf32, #tpu.memory_space<vmem>>, vector<16x128xf32>
    tpu.vector_store %arg4[%c0_8, %c0_9], %14 {strides = array<i32>} : memref<16x128xf32, #tpu.memory_space<vmem>>, vector<16x128xf32>,
    return
  }
  func.func @transform_0(%arg0: i32) -> (i32, i32) {
    %c0_i32 = arith.constant 0 : i32
    %c0_i32_0 = arith.constant 0 : i32
    return %arg0, %c0_i32 : i32, i32
  }
  func.func @transform_1(%arg0: i32) -> (i32, i32) {
    %c0_i32 = arith.constant 0 : i32
    %c0_i32_0 = arith.constant 0 : i32
    %c0_i32_1 = arith.constant 0 : i32
    return %c0_i32, %c0_i32_0 : i32, i32
  }
  func.func @transform_2(%arg0: i32) -> (i32, i32) {
    %c0_i32 = arith.constant 0 : i32
    %c0_i32_0 = arith.constant 0 : i32
    %c0_i32_1 = arith.constant 0 : i32
    return %c0_i32, %c0_i32_0 : i32, i32
  }
  func.func @transform_3(%arg0: i32) -> (i32, i32) {
    %c0_i32 = arith.constant 0 : i32
    %c0_i32_0 = arith.constant 0 : i32
    return %arg0, %c0_i32 : i32, i32
  }
}

</mosaic_0001>

<llo_original>
// kernel: tpu_custom_call.1
$region0: #{tpu_custom_call.1}
  #allocation0 [shape = 'u32[]', space=smem, size = 0x4, offset = 0x4, fixed_abs, tag = 'smem constant byte address 0x4 - core index']
  #allocation1 [shape = 'u32[72,128]{1,0:T(1,128)}', space=vmem, size = 0x9000, scoped, tag = 'internal scratch']
  %s0 = inlined_call_operand.hbm [shape: f32[16,512], index: 0, kind: input, shape index: {}]
  %s1 = inlined_call_operand.hbm [shape: f32[512,768], index: 1, kind: input, shape index: {}]
  %s2 = inlined_call_operand.hbm [shape: f32[384,128], index: 2, kind: input, shape index: {}]
  %s3 = inlined_call_operand.hbm [shape: f32[16,128], index: 3, kind: output, shape index: {}]
  %s4 = sld [smem:[#allocation0]]
  $region34: #{tpu_custom_call.1} parent=0
    _
  %s6 = ssub.s32 1, %s4
  %s7 = scalar_select 0, %s6, %s4
  $region1: #{tpu_custom_call.1} parent=0
    #allocation2 [shape = 'u8[32768]{0}', space=vmem, size = 0x8000, scoped, tag = 'input window, operand 0, single buffered']
    #allocation3 [shape = 's32[1]{0}', space=sflag, size = 0x4, scoped, tag = 'scoped memory for tpu_custom_call.1']
    #allocation4 [shape = 's32[1]{0}', space=sflag, size = 0x4, scoped, tag = 'scoped memory for tpu_custom_call.1']
    #allocation5 [shape = 'u8[1572864]{0}', space=vmem, size = 0x180000, scoped, tag = 'input window, operand 1, single buffered']
    #allocation6 [shape = 's32[1]{0}', space=sflag, size = 0x4, scoped, tag = 'scoped memory for tpu_custom_call.1']
    #allocation7 [shape = 'u8[196608]{0}', space=vmem, size = 0x30000, scoped, tag = 'input window, operand 2, single buffered']
    #allocation8 [shape = 'u8[8192]{0}', space=vmem, size = 0x2000, scoped, tag = 'output window, operand 0, single buffered']
    %8 = vsyncpa [#allocation3], 0
    %9 = vsyncpa [#allocation6], 0
    %10 = vsyncpa [#allocation4], 0
    // Predicated region
    $region2: #{tpu_custom_call.1} parent=1 // pred_check
      _
    $region3: #{tpu_custom_call.1} parent=1 // pred_check_branch
      %12 = sbr.rel (0) target = $region5
    $region4: #{tpu_custom_call.1} parent=1 // pred_region
      %14 = vsyncadd [#allocation3], 0
      %s15 = sshll.u32 %s0, 4
      %s16 = int_to_ptr.hbm [resolvable:$true] %s15
      %s17 = sshll.u32 [#allocation2], 4
      %s18 = int_to_ptr.vmem [resolvable:$true] %s17
      %23 = dma.hbm_to_vmem [thread:$0]  %s16, 1024, %s18, [#allocation3], 512, 512, 32
    $region5: #{tpu_custom_call.1} parent=1 // pred_fallthru
      _
    // Predicated region
    $region6: #{tpu_custom_call.1} parent=1 // pred_check
      _
    $region7: #{tpu_custom_call.1} parent=1 // pred_check_branch
      %25 = sbr.rel (0) target = $region9
    $region8: #{tpu_custom_call.1} parent=1 // pred_region
      %27 = vsyncadd [#allocation6], 0
      %s28 = sshll.u32 %s1, 4
      %s29 = int_to_ptr.hbm [resolvable:$true] %s28
      %s30 = sshll.u32 [#allocation5], 4
      %s31 = int_to_ptr.vmem [resolvable:$true] %s30
      %36 = dma.hbm_to_vmem [thread:$0]  %s29, 49152, %s31, [#allocation6], 768, 768, 48
    $region9: #{tpu_custom_call.1} parent=1 // pred_fallthru
      _
    // Predicated region
    $region10: #{tpu_custom_call.1} parent=1 // pred_check
      _
    $region11: #{tpu_custom_call.1} parent=1 // pred_check_branch
      %38 = sbr.rel (0) target = $region13
    $region12: #{tpu_custom_call.1} parent=1 // pred_region
      %40 = vsyncadd [#allocation6], 0
      %s41 = sshll.u32 %s2, 4
      %s42 = int_to_ptr.hbm [resolvable:$true] %s41
      %s43 = sshll.u32 [#allocation7], 4
      %s44 = int_to_ptr.vmem [resolvable:$true] %s43
      %49 = dma.hbm_to_vmem [thread:$0]  %s42, 6144, %s44, [#allocation6], 128, 128, 8
    $region13: #{tpu_custom_call.1} parent=1 // pred_fallthru
      _
    // Predicated region
    $region14: #{tpu_custom_call.1} parent=1 // pred_check
      _
    $region15: #{tpu_custom_call.1} parent=1 // pred_check_branch
      %51 = sbr.rel (0) target = $region17
    $region16: #{tpu_custom_call.1} parent=1 // pred_region
      %53 = dma.done [#allocation3], 1024
    $region17: #{tpu_custom_call.1} parent=1 // pred_fallthru
      _
    // Predicated region
    $region18: #{tpu_custom_call.1} parent=1 // pred_check
      _
    $region19: #{tpu_custom_call.1} parent=1 // pred_check_branch
      %55 = sbr.rel (0) target = $region21
    $region20: #{tpu_custom_call.1} parent=1 // pred_region
      %57 = dma.done [#allocation6], 49152
    $region21: #{tpu_custom_call.1} parent=1 // pred_fallthru
      _
    // Predicated region
    $region22: #{tpu_custom_call.1} parent=1 // pred_check
      _
    $region23: #{tpu_custom_call.1} parent=1 // pred_check_branch
      %59 = sbr.rel (0) target = $region25
    $region24: #{tpu_custom_call.1} parent=1 // pred_region
      %61 = dma.done [#allocation6], 6144
    $region25: #{tpu_custom_call.1} parent=1 // pred_fallthru
      _
    %v62 = vld [vmem:[#allocation2] sm:$0xff]
    %v63 = vld [vmem:[#allocation2 + $0x8] sm:$0xff]
    %v64 = vld [vmem:[#allocation2 + $0x10] sm:$0xff]
    %v65 = vld [vmem:[#allocation2 + $0x18] sm:$0xff]
    %v66 = vld [vmem:[#allocation2 + $0x20] sm:$0xff]
    %v67 = vld [vmem:[#allocation2 + $0x28] sm:$0xff]
    %v68 = vld [vmem:[#allocation2 + $0x30] sm:$0xff]
    %v69 = vld [vmem:[#allocation2 + $0x38] sm:$0xff]
    %v70 = vld [vmem:[#allocation5] sm:$0xff]
    %v71 = vld [vmem:[#allocation5 + $0x8] sm:$0xff]
    %v72 = vld [vmem:[#allocation5 + $0x10] sm:$0xff]
    %v73 = vld [vmem:[#allocation5 + $0x18] sm:$0xff]
    %v74 = vld [vmem:[#allocation5 + $0x20] sm:$0xff]
    %v75 = vld [vmem:[#allocation5 + $0x28] sm:$0xff]
    %v76 = vld [vmem:[#allocation5 + $0x30] sm:$0xff]
    %v77 = vld [vmem:[#allocation5 + $0x38] sm:$0xff]
    %v78 = vld [vmem:[#allocation5 + $0x40] sm:$0xff]
    %v79 = vld [vmem:[#allocation5 + $0x48] sm:$0xff]
    %v80 = vld [vmem:[#allocation5 + $0x50] sm:$0xff]
    %v81 = vld [vmem:[#allocation5 + $0x58] sm:$0xff]
    %v82 = vld [vmem:[#allocation5 + $0x60] sm:$0xff]
    %v83 = vld [vmem:[#allocation5 + $0x68] sm:$0xff]
    %v84 = vld [vmem:[#allocation5 + $0x70] sm:$0xff]
    %v85 = vld [vmem:[#allocation5 + $0x78] sm:$0xff]
    %v86 = vld [vmem:[#allocation5 + $0x80] sm:$0xff]
    %v87 = vld [vmem:[#allocation5 + $0x88] sm:$0xff]
    %v88 = vld [vmem:[#allocation5 + $0x90] sm:$0xff]
    %v89 = vld [vmem:[#allocation5 + $0x98] sm:$0xff]
    %v90 = vld [vmem:[#allocation5 + $0xa0] sm:$0xff]
    %v91 = vld [vmem:[#allocation5 + $0xa8] sm:$0xff]
    %v92 = vld [vmem:[#allocation5 + $0xb0] sm:$0xff]
    %v93 = vld [vmem:[#allocation5 + $0xb8] sm:$0xff]
    %v94 = vld [vmem:[#allocation5 + $0xc0] sm:$0xff]
    %v95 = vld [vmem:[#allocation5 + $0xc8] sm:$0xff]
    %v96 = vld [vmem:[#allocation5 + $0xd0] sm:$0xff]
    %v97 = vld [vmem:[#allocation5 + $0xd8] sm:$0xff]
    %v98 = vld [vmem:[#allocation5 + $0xe0] sm:$0xff]
    %v99 = vld [vmem:[#allocation5 + $0xe8] sm:$0xff]
    %v100 = vld [vmem:[#allocation5 + $0xf0] sm:$0xff]
    %v101 = vld [vmem:[#allocation5 + $0xf8] sm:$0xff]
    %v102 = vld [vmem:[#allocation5 + $0x100] sm:$0xff]
    %v103 = vld [vmem:[#allocation5 + $0x108] sm:$0xff]
    %v104 = vld [vmem:[#allocation5 + $0x110] sm:$0xff]
    %v105 = vld [vmem:[#allocation5 + $0x118] sm:$0xff]
    %v106 = vld [vmem:[#allocation5 + $0x120] sm:$0xff]
    %v107 = vld [vmem:[#allocation5 + $0x128] sm:$0xff]
    %v108 = vld [vmem:[#allocation5 + $0x130] sm:$0xff]
    %v109 = vld [vmem:[#allocation5 + $0x138] sm:$0xff]
    %v110 = vld [vmem:[#allocation5 + $0x140] sm:$0xff]
    %v111 = vld [vmem:[#allocation5 + $0x148] sm:$0xff]
    %v112 = vld [vmem:[#allocation5 + $0x150] sm:$0xff]
    %v113 = vld [vmem:[#allocation5 + $0x158] sm:$0xff]
    %v114 = vld [vmem:[#allocation5 + $0x160] sm:$0xff]
    %v115 = vld [vmem:[#allocation5 + $0x168] sm:$0xff]
    %v116 = vld [vmem:[#allocation5 + $0x170] sm:$0xff]
    %v117 = vld [vmem:[#allocation5 + $0x178] sm:$0xff]
    %v118 = vld [vmem:[#allocation5 + $0x180] sm:$0xff]
    %v119 = vld [vmem:[#allocation5 + $0x188] sm:$0xff]
    %v120 = vld [vmem:[#allocation5 + $0x190] sm:$0xff]
    %v121 = vld [vmem:[#allocation5 + $0x198] sm:$0xff]
    %v122 = vld [vmem:[#allocation5 + $0x1a0] sm:$0xff]
    %v123 = vld [vmem:[#allocation5 + $0x1a8] sm:$0xff]
    %v124 = vld [vmem:[#allocation5 + $0x1b0] sm:$0xff]
    %v125 = vld [vmem:[#allocation5 + $0x1b8] sm:$0xff]
    %v126 = vld [vmem:[#allocation5 + $0x1c0] sm:$0xff]
    %v127 = vld [vmem:[#allocation5 + $0x1c8] sm:$0xff]
    %v128 = vld [vmem:[#allocation5 + $0x1d0] sm:$0xff]
    %v129 = vld [vmem:[#allocation5 + $0x1d8] sm:$0xff]
    %v130 = vld [vmem:[#allocation5 + $0x1e0] sm:$0xff]
    %v131 = vld [vmem:[#allocation5 + $0x1e8] sm:$0xff]
    %v132 = vld [vmem:[#allocation5 + $0x1f0] sm:$0xff]
    %v133 = vld [vmem:[#allocation5 + $0x1f8] sm:$0xff]
    %v134 = vld [vmem:[#allocation5 + $0x200] sm:$0xff]
    %v135 = vld [vmem:[#allocation5 + $0x208] sm:$0xff]
    %v136 = vld [vmem:[#allocation5 + $0x210] sm:$0xff]
    %v137 = vld [vmem:[#allocation5 + $0x218] sm:$0xff]
    %v138 = vld [vmem:[#allocation5 + $0x220] sm:$0xff]
    %v139 = vld [vmem:[#allocation5 + $0x228] sm:$0xff]
    %v140 = vld [vmem:[#allocation5 + $0x230] sm:$0xff]
    %v141 = vld [vmem:[#allocation5 + $0x238] sm:$0xff]
    %v142 = vld [vmem:[#allocation5 + $0x240] sm:$0xff]
    %v143 = vld [vmem:[#allocation5 + $0x248] sm:$0xff]
    %v144 = vld [vmem:[#allocation5 + $0x250] sm:$0xff]
    %v145 = vld [vmem:[#allocation5 + $0x258] sm:$0xff]
    %v146 = vld [vmem:[#allocation5 + $0x260] sm:$0xff]
    %v147 = vld [vmem:[#allocation5 + $0x268] sm:$0xff]
    %v148 = vld [vmem:[#allocation5 + $0x270] sm:$0xff]
    %v149 = vld [vmem:[#allocation5 + $0x278] sm:$0xff]
    %v150 = vld [vmem:[#allocation5 + $0x280] sm:$0xff]
    %v151 = vld [vmem:[#allocation5 + $0x288] sm:$0xff]
    %v152 = vld [vmem:[#allocation5 + $0x290] sm:$0xff]
    %v153 = vld [vmem:[#allocation5 + $0x298] sm:$0xff]
    %v154 = vld [vmem:[#allocation5 + $0x2a0] sm:$0xff]
    %v155 = vld [vmem:[#allocation5 + $0x2a8] sm:$0xff]
    %v156 = vld [vmem:[#allocation5 + $0x2b0] sm:$0xff]
    %v157 = vld [vmem:[#allocation5 + $0x2b8] sm:$0xff]
    %v158 = vld [vmem:[#allocation5 + $0x2c0] sm:$0xff]
    %v159 = vld [vmem:[#allocation5 + $0x2c8] sm:$0xff]
    %v160 = vld [vmem:[#allocation5 + $0x2d0] sm:$0xff]
    %v161 = vld [vmem:[#allocation5 + $0x2d8] sm:$0xff]
    %v162 = vld [vmem:[#allocation5 + $0x2e0] sm:$0xff]
    %v163 = vld [vmem:[#allocation5 + $0x2e8] sm:$0xff]
    %v164 = vld [vmem:[#allocation5 + $0x2f0] sm:$0xff]
    %v165 = vld [vmem:[#allocation5 + $0x2f8] sm:$0xff]
    %v166 = vld [vmem:[#allocation5 + $0x300] sm:$0xff]
    %v167 = vld [vmem:[#allocation5 + $0x308] sm:$0xff]
    %v168 = vld [vmem:[#allocation5 + $0x310] sm:$0xff]
    %v169 = vld [vmem:[#allocation5 + $0x318] sm:$0xff]
    %v170 = vld [vmem:[#allocation5 + $0x320] sm:$0xff]
    %v171 = vld [vmem:[#allocation5 + $0x328] sm:$0xff]
    %v172 = vld [vmem:[#allocation5 + $0x330] sm:$0xff]
    %v173 = vld [vmem:[#allocation5 + $0x338] sm:$0xff]
    %v174 = vld [vmem:[#allocation5 + $0x340] sm:$0xff]
    %v175 = vld [vmem:[#allocation5 + $0x348] sm:$0xff]
    %v176 = vld [vmem:[#allocation5 + $0x350] sm:$0xff]
    %v177 = vld [vmem:[#allocation5 + $0x358] sm:$0xff]
    %v178 = vld [vmem:[#allocation5 + $0x360] sm:$0xff]
    %v179 = vld [vmem:[#allocation5 + $0x368] sm:$0xff]
    %v180 = vld [vmem:[#allocation5 + $0x370] sm:$0xff]
    %v181 = vld [vmem:[#allocation5 + $0x378] sm:$0xff]
    %v182 = vld [vmem:[#allocation5 + $0x380] sm:$0xff]
    %v183 = vld [vmem:[#allocation5 + $0x388] sm:$0xff]
    %v184 = vld [vmem:[#allocation5 + $0x390] sm:$0xff]
    %v185 = vld [vmem:[#allocation5 + $0x398] sm:$0xff]
    %v186 = vld [vmem:[#allocation5 + $0x3a0] sm:$0xff]
    %v187 = vld [vmem:[#allocation5 + $0x3a8] sm:$0xff]
    %v188 = vld [vmem:[#allocation5 + $0x3b0] sm:$0xff]
    %v189 = vld [vmem:[#allocation5 + $0x3b8] sm:$0xff]
    %v190 = vld [vmem:[#allocation5 + $0x3c0] sm:$0xff]
    %v191 = vld [vmem:[#allocation5 + $0x3c8] sm:$0xff]
    %v192 = vld [vmem:[#allocation5 + $0x3d0] sm:$0xff]
    %v193 = vld [vmem:[#allocation5 + $0x3d8] sm:$0xff]
    %v194 = vld [vmem:[#allocation5 + $0x3e0] sm:$0xff]
    %v195 = vld [vmem:[#allocation5 + $0x3e8] sm:$0xff]
    %v196 = vld [vmem:[#allocation5 + $0x3f0] sm:$0xff]
    %v197 = vld [vmem:[#allocation5 + $0x3f8] sm:$0xff]
    %v198 = vld [vmem:[#allocation5 + $0x400] sm:$0xff]
    %v199 = vld [vmem:[#allocation5 + $0x408] sm:$0xff]
    %v200 = vld [vmem:[#allocation5 + $0x410] sm:$0xff]
    %v201 = vld [vmem:[#allocation5 + $0x418] sm:$0xff]
    %v202 = vld [vmem:[#allocation5 + $0x420] sm:$0xff]
    %v203 = vld [vmem:[#allocation5 + $0x428] sm:$0xff]
    %v204 = vld [vmem:[#allocation5 + $0x430] sm:$0xff]
    %v205 = vld [vmem:[#allocation5 + $0x438] sm:$0xff]
    %v206 = vld [vmem:[#allocation5 + $0x440] sm:$0xff]
    %v207 = vld [vmem:[#allocation5 + $0x448] sm:$0xff]
    %v208 = vld [vmem:[#allocation5 + $0x450] sm:$0xff]
    %v209 = vld [vmem:[#allocation5 + $0x458] sm:$0xff]
    %v210 = vld [vmem:[#allocation5 + $0x460] sm:$0xff]
    %v211 = vld [vmem:[#allocation5 + $0x468] sm:$0xff]
    %v212 = vld [vmem:[#allocation5 + $0x470] sm:$0xff]
    %v213 = vld [vmem:[#allocation5 + $0x478] sm:$0xff]
    %v214 = vld [vmem:[#allocation5 + $0x480] sm:$0xff]
    %v215 = vld [vmem:[#allocation5 + $0x488] sm:$0xff]
    %v216 = vld [vmem:[#allocation5 + $0x490] sm:$0xff]
    %v217 = vld [vmem:[#allocation5 + $0x498] sm:$0xff]
    %v218 = vld [vmem:[#allocation5 + $0x4a0] sm:$0xff]
    %v219 = vld [vmem:[#allocation5 + $0x4a8] sm:$0xff]
    %v220 = vld [vmem:[#allocation5 + $0x4b0] sm:$0xff]
    %v221 = vld [vmem:[#allocation5 + $0x4b8] sm:$0xff]
    %v222 = vld [vmem:[#allocation5 + $0x4c0] sm:$0xff]
    %v223 = vld [vmem:[#allocation5 + $0x4c8] sm:$0xff]
    %v224 = vld [vmem:[#allocation5 + $0x4d0] sm:$0xff]
    %v225 = vld [vmem:[#allocation5 + $0x4d8] sm:$0xff]
    %v226 = vld [vmem:[#allocation5 + $0x4e0] sm:$0xff]
    %v227 = vld [vmem:[#allocation5 + $0x4e8] sm:$0xff]
    %v228 = vld [vmem:[#allocation5 + $0x4f0] sm:$0xff]
    %v229 = vld [vmem:[#allocation5 + $0x4f8] sm:$0xff]
    %v230 = vld [vmem:[#allocation5 + $0x500] sm:$0xff]
    %v231 = vld [vmem:[#allocation5 + $0x508] sm:$0xff]
    %v232 = vld [vmem:[#allocation5 + $0x510] sm:$0xff]
    %v233 = vld [vmem:[#allocation5 + $0x518] sm:$0xff]
    %v234 = vld [vmem:[#allocation5 + $0x520] sm:$0xff]
    %v235 = vld [vmem:[#allocation5 + $0x528] sm:$0xff]
    %v236 = vld [vmem:[#allocation5 + $0x530] sm:$0xff]
    %v237 = vld [vmem:[#allocation5 + $0x538] sm:$0xff]
    %v238 = vld [vmem:[#allocation5 + $0x540] sm:$0xff]
    %v239 = vld [vmem:[#allocation5 + $0x548] sm:$0xff]
    %v240 = vld [vmem:[#allocation5 + $0x550] sm:$0xff]
    %v241 = vld [vmem:[#allocation5 + $0x558] sm:$0xff]
    %v242 = vld [vmem:[#allocation5 + $0x560] sm:$0xff]
    %v243 = vld [vmem:[#allocation5 + $0x568] sm:$0xff]
    %v244 = vld [vmem:[#allocation5 + $0x570] sm:$0xff]
    %v245 = vld [vmem:[#allocation5 + $0x578] sm:$0xff]
    %v246 = vld [vmem:[#allocation5 + $0x580] sm:$0xff]
    %v247 = vld [vmem:[#allocation5 + $0x588] sm:$0xff]
    %v248 = vld [vmem:[#allocation5 + $0x590] sm:$0xff]
    %v249 = vld [vmem:[#allocation5 + $0x598] sm:$0xff]
    %v250 = vld [vmem:[#allocation5 + $0x5a0] sm:$0xff]
    %v251 = vld [vmem:[#allocation5 + $0x5a8] sm:$0xff]
    %v252 = vld [vmem:[#allocation5 + $0x5b0] sm:$0xff]
    %v253 = vld [vmem:[#allocation5 + $0x5b8] sm:$0xff]
    %v254 = vld [vmem:[#allocation5 + $0x5c0] sm:$0xff]
    %v255 = vld [vmem:[#allocation5 + $0x5c8] sm:$0xff]
    %v256 = vld [vmem:[#allocation5 + $0x5d0] sm:$0xff]
    %v257 = vld [vmem:[#allocation5 + $0x5d8] sm:$0xff]
    %v258 = vld [vmem:[#allocation5 + $0x5e0] sm:$0xff]
    %v259 = vld [vmem:[#allocation5 + $0x5e8] sm:$0xff]
    %v260 = vld [vmem:[#allocation5 + $0x5f0] sm:$0xff]
    %v261 = vld [vmem:[#allocation5 + $0x5f8] sm:$0xff]
    %v262 = vld [vmem:[#allocation5 + $0x600] sm:$0xff]
    %v263 = vld [vmem:[#allocation5 + $0x608] sm:$0xff]
    %v264 = vld [vmem:[#allocation5 + $0x610] sm:$0xff]
    %v265 = vld [vmem:[#allocation5 + $0x618] sm:$0xff]
    %v266 = vld [vmem:[#allocation5 + $0x620] sm:$0xff]
    %v267 = vld [vmem:[#allocation5 + $0x628] sm:$0xff]
    %v268 = vld [vmem:[#allocation5 + $0x630] sm:$0xff]
    %v269 = vld [vmem:[#allocation5 + $0x638] sm:$0xff]
    %v270 = vld [vmem:[#allocation5 + $0x640] sm:$0xff]
    %v271 = vld [vmem:[#allocation5 + $0x648] sm:$0xff]
    %v272 = vld [vmem:[#allocation5 + $0x650] sm:$0xff]
    %v273 = vld [vmem:[#allocation5 + $0x658] sm:$0xff]
    %v274 = vld [vmem:[#allocation5 + $0x660] sm:$0xff]
    %v275 = vld [vmem:[#allocation5 + $0x668] sm:$0xff]
    %v276 = vld [vmem:[#allocation5 + $0x670] sm:$0xff]
    %v277 = vld [vmem:[#allocation5 + $0x678] sm:$0xff]
    %v278 = vld [vmem:[#allocation5 + $0x680] sm:$0xff]
    %v279 = vld [vmem:[#allocation5 + $0x688] sm:$0xff]
    %v280 = vld [vmem:[#allocation5 + $0x690] sm:$0xff]
    %v281 = vld [vmem:[#allocation5 + $0x698] sm:$0xff]
    %v282 = vld [vmem:[#allocation5 + $0x6a0] sm:$0xff]
    %v283 = vld [vmem:[#allocation5 + $0x6a8] sm:$0xff]
    %v284 = vld [vmem:[#allocation5 + $0x6b0] sm:$0xff]
    %v285 = vld [vmem:[#allocation5 + $0x6b8] sm:$0xff]
    %v286 = vld [vmem:[#allocation5 + $0x6c0] sm:$0xff]
    %v287 = vld [vmem:[#allocation5 + $0x6c8] sm:$0xff]
    %v288 = vld [vmem:[#allocation5 + $0x6d0] sm:$0xff]
    %v289 = vld [vmem:[#allocation5 + $0x6d8] sm:$0xff]
    %v290 = vld [vmem:[#allocation5 + $0x6e0] sm:$0xff]
    %v291 = vld [vmem:[#allocation5 + $0x6e8] sm:$0xff]
    %v292 = vld [vmem:[#allocation5 + $0x6f0] sm:$0xff]
    %v293 = vld [vmem:[#allocation5 + $0x6f8] sm:$0xff]
    %v294 = vld [vmem:[#allocation5 + $0x700] sm:$0xff]
    %v295 = vld [vmem:[#allocation5 + $0x708] sm:$0xff]
    %v296 = vld [vmem:[#allocation5 + $0x710] sm:$0xff]
    %v297 = vld [vmem:[#allocation5 + $0x718] sm:$0xff]
    %v298 = vld [vmem:[#allocation5 + $0x720] sm:$0xff]
    %v299 = vld [vmem:[#allocation5 + $0x728] sm:$0xff]
    %v300 = vld [vmem:[#allocation5 + $0x730] sm:$0xff]
    %v301 = vld [vmem:[#allocation5 + $0x738] sm:$0xff]
    %v302 = vld [vmem:[#allocation5 + $0x740] sm:$0xff]
    %v303 = vld [vmem:[#allocation5 + $0x748] sm:$0xff]
    %v304 = vld [vmem:[#allocation5 + $0x750] sm:$0xff]
    %v305 = vld [vmem:[#allocation5 + $0x758] sm:$0xff]
    %v306 = vld [vmem:[#allocation5 + $0x760] sm:$0xff]
    %v307 = vld [vmem:[#allocation5 + $0x768] sm:$0xff]
    %v308 = vld [vmem:[#allocation5 + $0x770] sm:$0xff]
    %v309 = vld [vmem:[#allocation5 + $0x778] sm:$0xff]
    %v310 = vld [vmem:[#allocation5 + $0x780] sm:$0xff]
    %v311 = vld [vmem:[#allocation5 + $0x788] sm:$0xff]
    %v312 = vld [vmem:[#allocation5 + $0x790] sm:$0xff]
    %v313 = vld [vmem:[#allocation5 + $0x798] sm:$0xff]
    %v314 = vld [vmem:[#allocation5 + $0x7a0] sm:$0xff]
    %v315 = vld [vmem:[#allocation5 + $0x7a8] sm:$0xff]
    %v316 = vld [vmem:[#allocation5 + $0x7b0] sm:$0xff]
    %v317 = vld [vmem:[#allocation5 + $0x7b8] sm:$0xff]
    %v318 = vld [vmem:[#allocation5 + $0x7c0] sm:$0xff]
    %v319 = vld [vmem:[#allocation5 + $0x7c8] sm:$0xff]
    %v320 = vld [vmem:[#allocation5 + $0x7d0] sm:$0xff]
    %v321 = vld [vmem:[#allocation5 + $0x7d8] sm:$0xff]
    %v322 = vld [vmem:[#allocation5 + $0x7e0] sm:$0xff]
    %v323 = vld [vmem:[#allocation5 + $0x7e8] sm:$0xff]
    %v324 = vld [vmem:[#allocation5 + $0x7f0] sm:$0xff]
    %v325 = vld [vmem:[#allocation5 + $0x7f8] sm:$0xff]
    %v326 = vld [vmem:[#allocation5 + $0x800] sm:$0xff]
    %v327 = vld [vmem:[#allocation5 + $0x808] sm:$0xff]
    %v328 = vld [vmem:[#allocation5 + $0x810] sm:$0xff]
    %v329 = vld [vmem:[#allocation5 + $0x818] sm:$0xff]
    %v330 = vld [vmem:[#allocation5 + $0x820] sm:$0xff]
    %v331 = vld [vmem:[#allocation5 + $0x828] sm:$0xff]
    %v332 = vld [vmem:[#allocation5 + $0x830] sm:$0xff]
    %v333 = vld [vmem:[#allocation5 + $0x838] sm:$0xff]
    %v334 = vld [vmem:[#allocation5 + $0x840] sm:$0xff]
    %v335 = vld [vmem:[#allocation5 + $0x848] sm:$0xff]
    %v336 = vld [vmem:[#allocation5 + $0x850] sm:$0xff]
    %v337 = vld [vmem:[#allocation5 + $0x858] sm:$0xff]
    %v338 = vld [vmem:[#allocation5 + $0x860] sm:$0xff]
    %v339 = vld [vmem:[#allocation5 + $0x868] sm:$0xff]
    %v340 = vld [vmem:[#allocation5 + $0x870] sm:$0xff]
    %v341 = vld [vmem:[#allocation5 + $0x878] sm:$0xff]
    %v342 = vld [vmem:[#allocation5 + $0x880] sm:$0xff]
    %v343 = vld [vmem:[#allocation5 + $0x888] sm:$0xff]
    %v344 = vld [vmem:[#allocation5 + $0x890] sm:$0xff]
    %v345 = vld [vmem:[#allocation5 + $0x898] sm:$0xff]
    %v346 = vld [vmem:[#allocation5 + $0x8a0] sm:$0xff]
    %v347 = vld [vmem:[#allocation5 + $0x8a8] sm:$0xff]
    %v348 = vld [vmem:[#allocation5 + $0x8b0] sm:$0xff]
    %v349 = vld [vmem:[#allocation5 + $0x8b8] sm:$0xff]
    %v350 = vld [vmem:[#allocation5 + $0x8c0] sm:$0xff]
    %v351 = vld [vmem:[#allocation5 + $0x8c8] sm:$0xff]
    %v352 = vld [vmem:[#allocation5 + $0x8d0] sm:$0xff]
    %v353 = vld [vmem:[#allocation5 + $0x8d8] sm:$0xff]
    %v354 = vld [vmem:[#allocation5 + $0x8e0] sm:$0xff]
    %v355 = vld [vmem:[#allocation5 + $0x8e8] sm:$0xff]
    %v356 = vld [vmem:[#allocation5 + $0x8f0] sm:$0xff]
    %v357 = vld [vmem:[#allocation5 + $0x8f8] sm:$0xff]
    %v358 = vld [vmem:[#allocation5 + $0x900] sm:$0xff]
    %v359 = vld [vmem:[#allocation5 + $0x908] sm:$0xff]
    %v360 = vld [vmem:[#allocation5 + $0x910] sm:$0xff]
    %v361 = vld [vmem:[#allocation5 + $0x918] sm:$0xff]
    %v362 = vld [vmem:[#allocation5 + $0x920] sm:$0xff]
    %v363 = vld [vmem:[#allocation5 + $0x928] sm:$0xff]
    %v364 = vld [vmem:[#allocation5 + $0x930] sm:$0xff]
    %v365 = vld [vmem:[#allocation5 + $0x938] sm:$0xff]
    %v366 = vld [vmem:[#allocation5 + $0x940] sm:$0xff]
    %v367 = vld [vmem:[#allocation5 + $0x948] sm:$0xff]
    %v368 = vld [vmem:[#allocation5 + $0x950] sm:$0xff]
    %v369 = vld [vmem:[#allocation5 + $0x958] sm:$0xff]
    %v370 = vld [vmem:[#allocation5 + $0x960] sm:$0xff]
    %v371 = vld [vmem:[#allocation5 + $0x968] sm:$0xff]
    %v372 = vld [vmem:[#allocation5 + $0x970] sm:$0xff]
    %v373 = vld [vmem:[#allocation5 + $0x978] sm:$0xff]
    %v374 = vld [vmem:[#allocation5 + $0x980] sm:$0xff]
    %v375 = vld [vmem:[#allocation5 + $0x988] sm:$0xff]
    %v376 = vld [vmem:[#allocation5 + $0x990] sm:$0xff]
    %v377 = vld [vmem:[#allocation5 + $0x998] sm:$0xff]
    %v378 = vld [vmem:[#allocation5 + $0x9a0] sm:$0xff]
    %v379 = vld [vmem:[#allocation5 + $0x9a8] sm:$0xff]
    %v380 = vld [vmem:[#allocation5 + $0x9b0] sm:$0xff]
    %v381 = vld [vmem:[#allocation5 + $0x9b8] sm:$0xff]
    %v382 = vld [vmem:[#allocation5 + $0x9c0] sm:$0xff]
    %v383 = vld [vmem:[#allocation5 + $0x9c8] sm:$0xff]
    %v384 = vld [vmem:[#allocation5 + $0x9d0] sm:$0xff]
    %v385 = vld [vmem:[#allocation5 + $0x9d8] sm:$0xff]
    %v386 = vld [vmem:[#allocation5 + $0x9e0] sm:$0xff]
    %v387 = vld [vmem:[#allocation5 + $0x9e8] sm:$0xff]
    %v388 = vld [vmem:[#allocation5 + $0x9f0] sm:$0xff]
    %v389 = vld [vmem:[#allocation5 + $0x9f8] sm:$0xff]
    %v390 = vld [vmem:[#allocation5 + $0xa00] sm:$0xff]
    %v391 = vld [vmem:[#allocation5 + $0xa08] sm:$0xff]
    %v392 = vld [vmem:[#allocation5 + $0xa10] sm:$0xff]
    %v393 = vld [vmem:[#allocation5 + $0xa18] sm:$0xff]
    %v394 = vld [vmem:[#allocation5 + $0xa20] sm:$0xff]
    %v395 = vld [vmem:[#allocation5 + $0xa28] sm:$0xff]
    %v396 = vld [vmem:[#allocation5 + $0xa30] sm:$0xff]
    %v397 = vld [vmem:[#allocation5 + $0xa38] sm:$0xff]
    %v398 = vld [vmem:[#allocation5 + $0xa40] sm:$0xff]
    %v399 = vld [vmem:[#allocation5 + $0xa48] sm:$0xff]
    %v400 = vld [vmem:[#allocation5 + $0xa50] sm:$0xff]
    %v401 = vld [vmem:[#allocation5 + $0xa58] sm:$0xff]
    %v402 = vld [vmem:[#allocation5 + $0xa60] sm:$0xff]
    %v403 = vld [vmem:[#allocation5 + $0xa68] sm:$0xff]
    %v404 = vld [vmem:[#allocation5 + $0xa70] sm:$0xff]
    %v405 = vld [vmem:[#allocation5 + $0xa78] sm:$0xff]
    %v406 = vld [vmem:[#allocation5 + $0xa80] sm:$0xff]
    %v407 = vld [vmem:[#allocation5 + $0xa88] sm:$0xff]
    %v408 = vld [vmem:[#allocation5 + $0xa90] sm:$0xff]
    %v409 = vld [vmem:[#allocation5 + $0xa98] sm:$0xff]
    %v410 = vld [vmem:[#allocation5 + $0xaa0] sm:$0xff]
    %v411 = vld [vmem:[#allocation5 + $0xaa8] sm:$0xff]
    %v412 = vld [vmem:[#allocation5 + $0xab0] sm:$0xff]
    %v413 = vld [vmem:[#allocation5 + $0xab8] sm:$0xff]
    %v414 = vld [vmem:[#allocation5 + $0xac0] sm:$0xff]
    %v415 = vld [vmem:[#allocation5 + $0xac8] sm:$0xff]
    %v416 = vld [vmem:[#allocation5 + $0xad0] sm:$0xff]
    %v417 = vld [vmem:[#allocation5 + $0xad8] sm:$0xff]
    %v418 = vld [vmem:[#allocation5 + $0xae0] sm:$0xff]
    %v419 = vld [vmem:[#allocation5 + $0xae8] sm:$0xff]
    %v420 = vld [vmem:[#allocation5 + $0xaf0] sm:$0xff]
    %v421 = vld [vmem:[#allocation5 + $0xaf8] sm:$0xff]
    %v422 = vld [vmem:[#allocation5 + $0xb00] sm:$0xff]
    %v423 = vld [vmem:[#allocation5 + $0xb08] sm:$0xff]
    %v424 = vld [vmem:[#allocation5 + $0xb10] sm:$0xff]
    %v425 = vld [vmem:[#allocation5 + $0xb18] sm:$0xff]
    %v426 = vld [vmem:[#allocation5 + $0xb20] sm:$0xff]
    %v427 = vld [vmem:[#allocation5 + $0xb28] sm:$0xff]
    %v428 = vld [vmem:[#allocation5 + $0xb30] sm:$0xff]
    %v429 = vld [vmem:[#allocation5 + $0xb38] sm:$0xff]
    %v430 = vld [vmem:[#allocation5 + $0xb40] sm:$0xff]
    %v431 = vld [vmem:[#allocation5 + $0xb48] sm:$0xff]
    %v432 = vld [vmem:[#allocation5 + $0xb50] sm:$0xff]
    %v433 = vld [vmem:[#allocation5 + $0xb58] sm:$0xff]
    %v434 = vld [vmem:[#allocation5 + $0xb60] sm:$0xff]
    %v435 = vld [vmem:[#allocation5 + $0xb68] sm:$0xff]
    %v436 = vld [vmem:[#allocation5 + $0xb70] sm:$0xff]
    %v437 = vld [vmem:[#allocation5 + $0xb78] sm:$0xff]
    %v438 = vld [vmem:[#allocation5 + $0xb80] sm:$0xff]
    %v439 = vld [vmem:[#allocation5 + $0xb88] sm:$0xff]
    %v440 = vld [vmem:[#allocation5 + $0xb90] sm:$0xff]
    %v441 = vld [vmem:[#allocation5 + $0xb98] sm:$0xff]
    %v442 = vld [vmem:[#allocation5 + $0xba0] sm:$0xff]
    %v443 = vld [vmem:[#allocation5 + $0xba8] sm:$0xff]
    %v444 = vld [vmem:[#allocation5 + $0xbb0] sm:$0xff]
    %v445 = vld [vmem:[#allocation5 + $0xbb8] sm:$0xff]
    %v446 = vld [vmem:[#allocation5 + $0xbc0] sm:$0xff]
    %v447 = vld [vmem:[#allocation5 + $0xbc8] sm:$0xff]
    %v448 = vld [vmem:[#allocation5 + $0xbd0] sm:$0xff]
    %v449 = vld [vmem:[#allocation5 + $0xbd8] sm:$0xff]
    %v450 = vld [vmem:[#allocation5 + $0xbe0] sm:$0xff]
    %v451 = vld [vmem:[#allocation5 + $0xbe8] sm:$0xff]
    %v452 = vld [vmem:[#allocation5 + $0xbf0] sm:$0xff]
    %v453 = vld [vmem:[#allocation5 + $0xbf8] sm:$0xff]
    %454 = vmatpush.msra.mxu0 %v160
    %455 = vmatpush.msra.mxu0 %v154
    %456 = vmatpush.msra.mxu0 %v148
    %457 = vmatpush.msra.mxu0 %v142
    %458 = vmatpush.msra.mxu0 %v136
    %459 = vmatpush.msra.mxu0 %v130
    %460 = vmatpush.msra.mxu0 %v124
    %461 = vmatpush.msra.mxu0 %v118
    %462 = vmatpush.msra.mxu0 %v112
    %463 = vmatpush.msra.mxu0 %v106
    %464 = vmatpush.msra.mxu0 %v100
    %465 = vmatpush.msra.mxu0 %v94
    %466 = vmatpush.msra.mxu0 %v88
    %467 = vmatpush.msra.mxu0 %v82
    %468 = vmatpush.msra.mxu0 %v76
    %469 = vmatpush.msra.mxu0 %v70
    %470 = vmatmul.f32.gmra.mxu0 %v62
    %v471 = vpop.f32.mrf.mxu0
    %v472 = vadd.f32 0.0, %v471
    %473 = vmatmul.f32.gmra.mxu0 %v66
    %v474 = vpop.f32.mrf.mxu0
    %v475 = vadd.f32 0.0, %v474
    %476 = vdwg.mxu0
    %477 = vmatpush.msra.mxu0 %v256
    %478 = vmatpush.msra.mxu0 %v250
    %479 = vmatpush.msra.mxu0 %v244
    %480 = vmatpush.msra.mxu0 %v238
    %481 = vmatpush.msra.mxu0 %v232
    %482 = vmatpush.msra.mxu0 %v226
    %483 = vmatpush.msra.mxu0 %v220
    %484 = vmatpush.msra.mxu0 %v214
    %485 = vmatpush.msra.mxu0 %v208
    %486 = vmatpush.msra.mxu0 %v202
    %487 = vmatpush.msra.mxu0 %v196
    %488 = vmatpush.msra.mxu0 %v190
    %489 = vmatpush.msra.mxu0 %v184
    %490 = vmatpush.msra.mxu0 %v178
    %491 = vmatpush.msra.mxu0 %v172
    %492 = vmatpush.msra.mxu0 %v166
    %493 = vmatmul.f32.gmra.mxu0 %v63
    %v494 = vpop.f32.mrf.mxu0
    %v495 = vadd.f32 %v472, %v494
    %496 = vmatmul.f32.gmra.mxu0 %v67
    %v497 = vpop.f32.mrf.mxu0
    %v498 = vadd.f32 %v475, %v497
    %499 = vdwg.mxu0
    %500 = vmatpush.msra.mxu0 %v352
    %501 = vmatpush.msra.mxu0 %v346
    %502 = vmatpush.msra.mxu0 %v340
    %503 = vmatpush.msra.mxu0 %v334
    %504 = vmatpush.msra.mxu0 %v328
    %505 = vmatpush.msra.mxu0 %v322
    %506 = vmatpush.msra.mxu0 %v316
    %507 = vmatpush.msra.mxu0 %v310
    %508 = vmatpush.msra.mxu0 %v304
    %509 = vmatpush.msra.mxu0 %v298
    %510 = vmatpush.msra.mxu0 %v292
    %511 = vmatpush.msra.mxu0 %v286
    %512 = vmatpush.msra.mxu0 %v280
    %513 = vmatpush.msra.mxu0 %v274
    %514 = vmatpush.msra.mxu0 %v268
    %515 = vmatpush.msra.mxu0 %v262
    %516 = vmatmul.f32.gmra.mxu0 %v64
    %v517 = vpop.f32.mrf.mxu0
    %v518 = vadd.f32 %v495, %v517
    %519 = vmatmul.f32.gmra.mxu0 %v68
    %v520 = vpop.f32.mrf.mxu0
    %v521 = vadd.f32 %v498, %v520
    %522 = vdwg.mxu0
    %523 = vmatpush.msra.mxu0 %v448
    %524 = vmatpush.msra.mxu0 %v442
    %525 = vmatpush.msra.mxu0 %v436
    %526 = vmatpush.msra.mxu0 %v430
    %527 = vmatpush.msra.mxu0 %v424
    %528 = vmatpush.msra.mxu0 %v418
    %529 = vmatpush.msra.mxu0 %v412
    %530 = vmatpush.msra.mxu0 %v406
    %531 = vmatpush.msra.mxu0 %v400
    %532 = vmatpush.msra.mxu0 %v394
    %533 = vmatpush.msra.mxu0 %v388
    %534 = vmatpush.msra.mxu0 %v382
    %535 = vmatpush.msra.mxu0 %v376
    %536 = vmatpush.msra.mxu0 %v370
    %537 = vmatpush.msra.mxu0 %v364
    %538 = vmatpush.msra.mxu0 %v358
    %539 = vmatmul.f32.gmra.mxu0 %v65
    %v540 = vpop.f32.mrf.mxu0
    %v541 = vadd.f32 %v518, %v540
    %542 = vmatmul.f32.gmra.mxu0 %v69
    %v543 = vpop.f32.mrf.mxu0
    %v544 = vadd.f32 %v521, %v543
    %545 = vdwg.mxu0
    %546 = vmatpush.msra.mxu0 %v161
    %547 = vmatpush.msra.mxu0 %v155
    %548 = vmatpush.msra.mxu0 %v149
    %549 = vmatpush.msra.mxu0 %v143
    %550 = vmatpush.msra.mxu0 %v137
    %551 = vmatpush.msra.mxu0 %v131
    %552 = vmatpush.msra.mxu0 %v125
    %553 = vmatpush.msra.mxu0 %v119
    %554 = vmatpush.msra.mxu0 %v113
    %555 = vmatpush.msra.mxu0 %v107
    %556 = vmatpush.msra.mxu0 %v101
    %557 = vmatpush.msra.mxu0 %v95
    %558 = vmatpush.msra.mxu0 %v89
    %559 = vmatpush.msra.mxu0 %v83
    %560 = vmatpush.msra.mxu0 %v77
    %561 = vmatpush.msra.mxu0 %v71
    %562 = vmatmul.f32.gmra.mxu0 %v62
    %v563 = vpop.f32.mrf.mxu0
    %v564 = vadd.f32 0.0, %v563
    %565 = vmatmul.f32.gmra.mxu0 %v66
    %v566 = vpop.f32.mrf.mxu0
    %v567 = vadd.f32 0.0, %v566
    %568 = vdwg.mxu0
    %569 = vmatpush.msra.mxu0 %v257
    %570 = vmatpush.msra.mxu0 %v251
    %571 = vmatpush.msra.mxu0 %v245
    %572 = vmatpush.msra.mxu0 %v239
    %573 = vmatpush.msra.mxu0 %v233
    %574 = vmatpush.msra.mxu0 %v227
    %575 = vmatpush.msra.mxu0 %v221
    %576 = vmatpush.msra.mxu0 %v215
    %577 = vmatpush.msra.mxu0 %v209
    %578 = vmatpush.msra.mxu0 %v203
    %579 = vmatpush.msra.mxu0 %v197
    %580 = vmatpush.msra.mxu0 %v191
    %581 = vmatpush.msra.mxu0 %v185
    %582 = vmatpush.msra.mxu0 %v179
    %583 = vmatpush.msra.mxu0 %v173
    %584 = vmatpush.msra.mxu0 %v167
    %585 = vmatmul.f32.gmra.mxu0 %v63
    %v586 = vpop.f32.mrf.mxu0
    %v587 = vadd.f32 %v564, %v586
    %588 = vmatmul.f32.gmra.mxu0 %v67
    %v589 = vpop.f32.mrf.mxu0
    %v590 = vadd.f32 %v567, %v589
    %591 = vdwg.mxu0
    %592 = vmatpush.msra.mxu0 %v353
    %593 = vmatpush.msra.mxu0 %v347
    %594 = vmatpush.msra.mxu0 %v341
    %595 = vmatpush.msra.mxu0 %v335
    %596 = vmatpush.msra.mxu0 %v329
    %597 = vmatpush.msra.mxu0 %v323
    %598 = vmatpush.msra.mxu0 %v317
    %599 = vmatpush.msra.mxu0 %v311
    %600 = vmatpush.msra.mxu0 %v305
    %601 = vmatpush.msra.mxu0 %v299
    %602 = vmatpush.msra.mxu0 %v293
    %603 = vmatpush.msra.mxu0 %v287
    %604 = vmatpush.msra.mxu0 %v281
    %605 = vmatpush.msra.mxu0 %v275
    %606 = vmatpush.msra.mxu0 %v269
    %607 = vmatpush.msra.mxu0 %v263
    %608 = vmatmul.f32.gmra.mxu0 %v64
    %v609 = vpop.f32.mrf.mxu0
    %v610 = vadd.f32 %v587, %v609
    %611 = vmatmul.f32.gmra.mxu0 %v68
    %v612 = vpop.f32.mrf.mxu0
    %v613 = vadd.f32 %v590, %v612
    %614 = vdwg.mxu0
    %615 = vmatpush.msra.mxu0 %v449
    %616 = vmatpush.msra.mxu0 %v443
    %617 = vmatpush.msra.mxu0 %v437
    %618 = vmatpush.msra.mxu0 %v431
    %619 = vmatpush.msra.mxu0 %v425
    %620 = vmatpush.msra.mxu0 %v419
    %621 = vmatpush.msra.mxu0 %v413
    %622 = vmatpush.msra.mxu0 %v407
    %623 = vmatpush.msra.mxu0 %v401
    %624 = vmatpush.msra.mxu0 %v395
    %625 = vmatpush.msra.mxu0 %v389
    %626 = vmatpush.msra.mxu0 %v383
    %627 = vmatpush.msra.mxu0 %v377
    %628 = vmatpush.msra.mxu0 %v371
    %629 = vmatpush.msra.mxu0 %v365
    %630 = vmatpush.msra.mxu0 %v359
    %631 = vmatmul.f32.gmra.mxu0 %v65
    %v632 = vpop.f32.mrf.mxu0
    %v633 = vadd.f32 %v610, %v632
    %634 = vmatmul.f32.gmra.mxu0 %v69
    %v635 = vpop.f32.mrf.mxu0
    %v636 = vadd.f32 %v613, %v635
    %637 = vdwg.mxu0
    %638 = vmatpush.msra.mxu0 %v162
    %639 = vmatpush.msra.mxu0 %v156
    %640 = vmatpush.msra.mxu0 %v150
    %641 = vmatpush.msra.mxu0 %v144
    %642 = vmatpush.msra.mxu0 %v138
    %643 = vmatpush.msra.mxu0 %v132
    %644 = vmatpush.msra.mxu0 %v126
    %645 = vmatpush.msra.mxu0 %v120
    %646 = vmatpush.msra.mxu0 %v114
    %647 = vmatpush.msra.mxu0 %v108
    %648 = vmatpush.msra.mxu0 %v102
    %649 = vmatpush.msra.mxu0 %v96
    %650 = vmatpush.msra.mxu0 %v90
    %651 = vmatpush.msra.mxu0 %v84
    %652 = vmatpush.msra.mxu0 %v78
    %653 = vmatpush.msra.mxu0 %v72
    %654 = vmatmul.f32.gmra.mxu0 %v62
    %v655 = vpop.f32.mrf.mxu0
    %v656 = vadd.f32 0.0, %v655
    %657 = vmatmul.f32.gmra.mxu0 %v66
    %v658 = vpop.f32.mrf.mxu0
    %v659 = vadd.f32 0.0, %v658
    %660 = vdwg.mxu0
    %661 = vmatpush.msra.mxu0 %v258
    %662 = vmatpush.msra.mxu0 %v252
    %663 = vmatpush.msra.mxu0 %v246
    %664 = vmatpush.msra.mxu0 %v240
    %665 = vmatpush.msra.mxu0 %v234
    %666 = vmatpush.msra.mxu0 %v228
    %667 = vmatpush.msra.mxu0 %v222
    %668 = vmatpush.msra.mxu0 %v216
    %669 = vmatpush.msra.mxu0 %v210
    %670 = vmatpush.msra.mxu0 %v204
    %671 = vmatpush.msra.mxu0 %v198
    %672 = vmatpush.msra.mxu0 %v192
    %673 = vmatpush.msra.mxu0 %v186
    %674 = vmatpush.msra.mxu0 %v180
    %675 = vmatpush.msra.mxu0 %v174
    %676 = vmatpush.msra.mxu0 %v168
    %677 = vmatmul.f32.gmra.mxu0 %v63
    %v678 = vpop.f32.mrf.mxu0
    %v679 = vadd.f32 %v656, %v678
    %680 = vmatmul.f32.gmra.mxu0 %v67
    %v681 = vpop.f32.mrf.mxu0
    %v682 = vadd.f32 %v659, %v681
    %683 = vdwg.mxu0
    %684 = vmatpush.msra.mxu0 %v354
    %685 = vmatpush.msra.mxu0 %v348
    %686 = vmatpush.msra.mxu0 %v342
    %687 = vmatpush.msra.mxu0 %v336
    %688 = vmatpush.msra.mxu0 %v330
    %689 = vmatpush.msra.mxu0 %v324
    %690 = vmatpush.msra.mxu0 %v318
    %691 = vmatpush.msra.mxu0 %v312
    %692 = vmatpush.msra.mxu0 %v306
    %693 = vmatpush.msra.mxu0 %v300
    %694 = vmatpush.msra.mxu0 %v294
    %695 = vmatpush.msra.mxu0 %v288
    %696 = vmatpush.msra.mxu0 %v282
    %697 = vmatpush.msra.mxu0 %v276
    %698 = vmatpush.msra.mxu0 %v270
    %699 = vmatpush.msra.mxu0 %v264
    %700 = vmatmul.f32.gmra.mxu0 %v64
    %v701 = vpop.f32.mrf.mxu0
    %v702 = vadd.f32 %v679, %v701
    %703 = vmatmul.f32.gmra.mxu0 %v68
    %v704 = vpop.f32.mrf.mxu0
    %v705 = vadd.f32 %v682, %v704
    %706 = vdwg.mxu0
    %707 = vmatpush.msra.mxu0 %v450
    %708 = vmatpush.msra.mxu0 %v444
    %709 = vmatpush.msra.mxu0 %v438
    %710 = vmatpush.msra.mxu0 %v432
    %711 = vmatpush.msra.mxu0 %v426
    %712 = vmatpush.msra.mxu0 %v420
    %713 = vmatpush.msra.mxu0 %v414
    %714 = vmatpush.msra.mxu0 %v408
    %715 = vmatpush.msra.mxu0 %v402
    %716 = vmatpush.msra.mxu0 %v396
    %717 = vmatpush.msra.mxu0 %v390
    %718 = vmatpush.msra.mxu0 %v384
    %719 = vmatpush.msra.mxu0 %v378
    %720 = vmatpush.msra.mxu0 %v372
    %721 = vmatpush.msra.mxu0 %v366
    %722 = vmatpush.msra.mxu0 %v360
    %723 = vmatmul.f32.gmra.mxu0 %v65
    %v724 = vpop.f32.mrf.mxu0
    %v725 = vadd.f32 %v702, %v724
    %726 = vmatmul.f32.gmra.mxu0 %v69
    %v727 = vpop.f32.mrf.mxu0
    %v728 = vadd.f32 %v705, %v727
    %729 = vdwg.mxu0
    %730 = vmatpush.msra.mxu0 %v163
    %731 = vmatpush.msra.mxu0 %v157
    %732 = vmatpush.msra.mxu0 %v151
    %733 = vmatpush.msra.mxu0 %v145
    %734 = vmatpush.msra.mxu0 %v139
    %735 = vmatpush.msra.mxu0 %v133
    %736 = vmatpush.msra.mxu0 %v127
    %737 = vmatpush.msra.mxu0 %v121
    %738 = vmatpush.msra.mxu0 %v115
    %739 = vmatpush.msra.mxu0 %v109
    %740 = vmatpush.msra.mxu0 %v103
    %741 = vmatpush.msra.mxu0 %v97
    %742 = vmatpush.msra.mxu0 %v91
    %743 = vmatpush.msra.mxu0 %v85
    %744 = vmatpush.msra.mxu0 %v79
    %745 = vmatpush.msra.mxu0 %v73
    %746 = vmatmul.f32.gmra.mxu0 %v62
    %v747 = vpop.f32.mrf.mxu0
    %v748 = vadd.f32 0.0, %v747
    %749 = vmatmul.f32.gmra.mxu0 %v66
    %v750 = vpop.f32.mrf.mxu0
    %v751 = vadd.f32 0.0, %v750
    %752 = vdwg.mxu0
    %753 = vmatpush.msra.mxu0 %v259
    %754 = vmatpush.msra.mxu0 %v253
    %755 = vmatpush.msra.mxu0 %v247
    %756 = vmatpush.msra.mxu0 %v241
    %757 = vmatpush.msra.mxu0 %v235
    %758 = vmatpush.msra.mxu0 %v229
    %759 = vmatpush.msra.mxu0 %v223
    %760 = vmatpush.msra.mxu0 %v217
    %761 = vmatpush.msra.mxu0 %v211
    %762 = vmatpush.msra.mxu0 %v205
    %763 = vmatpush.msra.mxu0 %v199
    %764 = vmatpush.msra.mxu0 %v193
    %765 = vmatpush.msra.mxu0 %v187
    %766 = vmatpush.msra.mxu0 %v181
    %767 = vmatpush.msra.mxu0 %v175
    %768 = vmatpush.msra.mxu0 %v169
    %769 = vmatmul.f32.gmra.mxu0 %v63
    %v770 = vpop.f32.mrf.mxu0
    %v771 = vadd.f32 %v748, %v770
    %772 = vmatmul.f32.gmra.mxu0 %v67
    %v773 = vpop.f32.mrf.mxu0
    %v774 = vadd.f32 %v751, %v773
    %775 = vdwg.mxu0
    %776 = vmatpush.msra.mxu0 %v355
    %777 = vmatpush.msra.mxu0 %v349
    %778 = vmatpush.msra.mxu0 %v343
    %779 = vmatpush.msra.mxu0 %v337
    %780 = vmatpush.msra.mxu0 %v331
    %781 = vmatpush.msra.mxu0 %v325
    %782 = vmatpush.msra.mxu0 %v319
    %783 = vmatpush.msra.mxu0 %v313
    %784 = vmatpush.msra.mxu0 %v307
    %785 = vmatpush.msra.mxu0 %v301
    %786 = vmatpush.msra.mxu0 %v295
    %787 = vmatpush.msra.mxu0 %v289
    %788 = vmatpush.msra.mxu0 %v283
    %789 = vmatpush.msra.mxu0 %v277
    %790 = vmatpush.msra.mxu0 %v271
    %791 = vmatpush.msra.mxu0 %v265
    %792 = vmatmul.f32.gmra.mxu0 %v64
    %v793 = vpop.f32.mrf.mxu0
    %v794 = vadd.f32 %v771, %v793
    %795 = vmatmul.f32.gmra.mxu0 %v68
    %v796 = vpop.f32.mrf.mxu0
    %v797 = vadd.f32 %v774, %v796
    %798 = vdwg.mxu0
    %799 = vmatpush.msra.mxu0 %v451
    %800 = vmatpush.msra.mxu0 %v445
    %801 = vmatpush.msra.mxu0 %v439
    %802 = vmatpush.msra.mxu0 %v433
    %803 = vmatpush.msra.mxu0 %v427
    %804 = vmatpush.msra.mxu0 %v421
    %805 = vmatpush.msra.mxu0 %v415
    %806 = vmatpush.msra.mxu0 %v409
    %807 = vmatpush.msra.mxu0 %v403
    %808 = vmatpush.msra.mxu0 %v397
    %809 = vmatpush.msra.mxu0 %v391
    %810 = vmatpush.msra.mxu0 %v385
    %811 = vmatpush.msra.mxu0 %v379
    %812 = vmatpush.msra.mxu0 %v373
    %813 = vmatpush.msra.mxu0 %v367
    %814 = vmatpush.msra.mxu0 %v361
    %815 = vmatmul.f32.gmra.mxu0 %v65
    %v816 = vpop.f32.mrf.mxu0
    %v817 = vadd.f32 %v794, %v816
    %818 = vmatmul.f32.gmra.mxu0 %v69
    %v819 = vpop.f32.mrf.mxu0
    %v820 = vadd.f32 %v797, %v819
    %821 = vdwg.mxu0
    %822 = vmatpush.msra.mxu0 %v164
    %823 = vmatpush.msra.mxu0 %v158
    %824 = vmatpush.msra.mxu0 %v152
    %825 = vmatpush.msra.mxu0 %v146
    %826 = vmatpush.msra.mxu0 %v140
    %827 = vmatpush.msra.mxu0 %v134
    %828 = vmatpush.msra.mxu0 %v128
    %829 = vmatpush.msra.mxu0 %v122
    %830 = vmatpush.msra.mxu0 %v116
    %831 = vmatpush.msra.mxu0 %v110
    %832 = vmatpush.msra.mxu0 %v104
    %833 = vmatpush.msra.mxu0 %v98
    %834 = vmatpush.msra.mxu0 %v92
    %835 = vmatpush.msra.mxu0 %v86
    %836 = vmatpush.msra.mxu0 %v80
    %837 = vmatpush.msra.mxu0 %v74
    %838 = vmatmul.f32.gmra.mxu0 %v62
    %v839 = vpop.f32.mrf.mxu0
    %v840 = vadd.f32 0.0, %v839
    %841 = vmatmul.f32.gmra.mxu0 %v66
    %v842 = vpop.f32.mrf.mxu0
    %v843 = vadd.f32 0.0, %v842
    %844 = vdwg.mxu0
    %845 = vmatpush.msra.mxu0 %v260
    %846 = vmatpush.msra.mxu0 %v254
    %847 = vmatpush.msra.mxu0 %v248
    %848 = vmatpush.msra.mxu0 %v242
    %849 = vmatpush.msra.mxu0 %v236
    %850 = vmatpush.msra.mxu0 %v230
    %851 = vmatpush.msra.mxu0 %v224
    %852 = vmatpush.msra.mxu0 %v218
    %853 = vmatpush.msra.mxu0 %v212
    %854 = vmatpush.msra.mxu0 %v206
    %855 = vmatpush.msra.mxu0 %v200
    %856 = vmatpush.msra.mxu0 %v194
    %857 = vmatpush.msra.mxu0 %v188
    %858 = vmatpush.msra.mxu0 %v182
    %859 = vmatpush.msra.mxu0 %v176
    %860 = vmatpush.msra.mxu0 %v170
    %861 = vmatmul.f32.gmra.mxu0 %v63
    %v862 = vpop.f32.mrf.mxu0
    %v863 = vadd.f32 %v840, %v862
    %864 = vmatmul.f32.gmra.mxu0 %v67
    %v865 = vpop.f32.mrf.mxu0
    %v866 = vadd.f32 %v843, %v865
    %867 = vdwg.mxu0
    %868 = vmatpush.msra.mxu0 %v356
    %869 = vmatpush.msra.mxu0 %v350
    %870 = vmatpush.msra.mxu0 %v344
    %871 = vmatpush.msra.mxu0 %v338
    %872 = vmatpush.msra.mxu0 %v332
    %873 = vmatpush.msra.mxu0 %v326
    %874 = vmatpush.msra.mxu0 %v320
    %875 = vmatpush.msra.mxu0 %v314
    %876 = vmatpush.msra.mxu0 %v308
    %877 = vmatpush.msra.mxu0 %v302
    %878 = vmatpush.msra.mxu0 %v296
    %879 = vmatpush.msra.mxu0 %v290
    %880 = vmatpush.msra.mxu0 %v284
    %881 = vmatpush.msra.mxu0 %v278
    %882 = vmatpush.msra.mxu0 %v272
    %883 = vmatpush.msra.mxu0 %v266
    %884 = vmatmul.f32.gmra.mxu0 %v64
    %v885 = vpop.f32.mrf.mxu0
    %v886 = vadd.f32 %v863, %v885
    %887 = vmatmul.f32.gmra.mxu0 %v68
    %v888 = vpop.f32.mrf.mxu0
    %v889 = vadd.f32 %v866, %v888
    %890 = vdwg.mxu0
    %891 = vmatpush.msra.mxu0 %v452
    %892 = vmatpush.msra.mxu0 %v446
    %893 = vmatpush.msra.mxu0 %v440
    %894 = vmatpush.msra.mxu0 %v434
    %895 = vmatpush.msra.mxu0 %v428
    %896 = vmatpush.msra.mxu0 %v422
    %897 = vmatpush.msra.mxu0 %v416
    %898 = vmatpush.msra.mxu0 %v410
    %899 = vmatpush.msra.mxu0 %v404
    %900 = vmatpush.msra.mxu0 %v398
    %901 = vmatpush.msra.mxu0 %v392
    %902 = vmatpush.msra.mxu0 %v386
    %903 = vmatpush.msra.mxu0 %v380
    %904 = vmatpush.msra.mxu0 %v374
    %905 = vmatpush.msra.mxu0 %v368
    %906 = vmatpush.msra.mxu0 %v362
    %907 = vmatmul.f32.gmra.mxu0 %v65
    %v908 = vpop.f32.mrf.mxu0
    %v909 = vadd.f32 %v886, %v908
    %910 = vmatmul.f32.gmra.mxu0 %v69
    %v911 = vpop.f32.mrf.mxu0
    %v912 = vadd.f32 %v889, %v911
    %913 = vdwg.mxu0
    %914 = vmatpush.msra.mxu0 %v165
    %915 = vmatpush.msra.mxu0 %v159
    %916 = vmatpush.msra.mxu0 %v153
    %917 = vmatpush.msra.mxu0 %v147
    %918 = vmatpush.msra.mxu0 %v141
    %919 = vmatpush.msra.mxu0 %v135
    %920 = vmatpush.msra.mxu0 %v129
    %921 = vmatpush.msra.mxu0 %v123
    %922 = vmatpush.msra.mxu0 %v117
    %923 = vmatpush.msra.mxu0 %v111
    %924 = vmatpush.msra.mxu0 %v105
    %925 = vmatpush.msra.mxu0 %v99
    %926 = vmatpush.msra.mxu0 %v93
    %927 = vmatpush.msra.mxu0 %v87
    %928 = vmatpush.msra.mxu0 %v81
    %929 = vmatpush.msra.mxu0 %v75
    %930 = vmatmul.f32.gmra.mxu0 %v62
    %v931 = vpop.f32.mrf.mxu0
    %v932 = vadd.f32 0.0, %v931
    %933 = vmatmul.f32.gmra.mxu0 %v66
    %v934 = vpop.f32.mrf.mxu0
    %v935 = vadd.f32 0.0, %v934
    %936 = vdwg.mxu0
    %937 = vmatpush.msra.mxu0 %v261
    %938 = vmatpush.msra.mxu0 %v255
    %939 = vmatpush.msra.mxu0 %v249
    %940 = vmatpush.msra.mxu0 %v243
    %941 = vmatpush.msra.mxu0 %v237
    %942 = vmatpush.msra.mxu0 %v231
    %943 = vmatpush.msra.mxu0 %v225
    %944 = vmatpush.msra.mxu0 %v219
    %945 = vmatpush.msra.mxu0 %v213
    %946 = vmatpush.msra.mxu0 %v207
    %947 = vmatpush.msra.mxu0 %v201
    %948 = vmatpush.msra.mxu0 %v195
    %949 = vmatpush.msra.mxu0 %v189
    %950 = vmatpush.msra.mxu0 %v183
    %951 = vmatpush.msra.mxu0 %v177
    %952 = vmatpush.msra.mxu0 %v171
    %953 = vmatmul.f32.gmra.mxu0 %v63
    %v954 = vpop.f32.mrf.mxu0
    %v955 = vadd.f32 %v932, %v954
    %956 = vmatmul.f32.gmra.mxu0 %v67
    %v957 = vpop.f32.mrf.mxu0
    %v958 = vadd.f32 %v935, %v957
    %959 = vdwg.mxu0
    %960 = vmatpush.msra.mxu0 %v357
    %961 = vmatpush.msra.mxu0 %v351
    %962 = vmatpush.msra.mxu0 %v345
    %963 = vmatpush.msra.mxu0 %v339
    %964 = vmatpush.msra.mxu0 %v333
    %965 = vmatpush.msra.mxu0 %v327
    %966 = vmatpush.msra.mxu0 %v321
    %967 = vmatpush.msra.mxu0 %v315
    %968 = vmatpush.msra.mxu0 %v309
    %969 = vmatpush.msra.mxu0 %v303
    %970 = vmatpush.msra.mxu0 %v297
    %971 = vmatpush.msra.mxu0 %v291
    %972 = vmatpush.msra.mxu0 %v285
    %973 = vmatpush.msra.mxu0 %v279
    %974 = vmatpush.msra.mxu0 %v273
    %975 = vmatpush.msra.mxu0 %v267
    %976 = vmatmul.f32.gmra.mxu0 %v64
    %v977 = vpop.f32.mrf.mxu0
    %v978 = vadd.f32 %v955, %v977
    %979 = vmatmul.f32.gmra.mxu0 %v68
    %v980 = vpop.f32.mrf.mxu0
    %v981 = vadd.f32 %v958, %v980
    %982 = vdwg.mxu0
    %983 = vmatpush.msra.mxu0 %v453
    %984 = vmatpush.msra.mxu0 %v447
    %985 = vmatpush.msra.mxu0 %v441
    %986 = vmatpush.msra.mxu0 %v435
    %987 = vmatpush.msra.mxu0 %v429
    %988 = vmatpush.msra.mxu0 %v423
    %989 = vmatpush.msra.mxu0 %v417
    %990 = vmatpush.msra.mxu0 %v411
    %991 = vmatpush.msra.mxu0 %v405
    %992 = vmatpush.msra.mxu0 %v399
    %993 = vmatpush.msra.mxu0 %v393
    %994 = vmatpush.msra.mxu0 %v387
    %995 = vmatpush.msra.mxu0 %v381
    %996 = vmatpush.msra.mxu0 %v375
    %997 = vmatpush.msra.mxu0 %v369
    %998 = vmatpush.msra.mxu0 %v363
    %999 = vmatmul.f32.gmra.mxu0 %v65
    %v1000 = vpop.f32.mrf.mxu0
    %v1001 = vadd.f32 %v978, %v1000
    %1002 = vmatmul.f32.gmra.mxu0 %v69
    %v1003 = vpop.f32.mrf.mxu0
    %v1004 = vadd.f32 %v981, %v1003
    %1005 = vdwg.mxu0
    %v1006 = vmul.f32 %v541, %v541
    %v1007 = vmul.f32 %v633, %v633
    %v1008 = vmul.f32 %v725, %v725
    %v1009 = vmul.f32 %v544, %v544
    %v1010 = vmul.f32 %v636, %v636
    %v1011 = vmul.f32 %v728, %v728
    %v1012 = vmul.f32 %v817, %v817
    %v1013 = vmul.f32 %v909, %v909
    %v1014 = vmul.f32 %v1001, %v1001
    %v1015 = vmul.f32 %v820, %v820
    %v1016 = vmul.f32 %v912, %v912
    %v1017 = vmul.f32 %v1004, %v1004
    %v1018 = vadd.f32 %v1006, %v1012
    %v1019 = vadd.f32 %v1007, %v1013
    %v1020 = vadd.f32 %v1008, %v1014
    %v1021 = vadd.f32 %v1009, %v1015
    %v1022 = vadd.f32 %v1010, %v1016
    %v1023 = vadd.f32 %v1011, %v1017
    %v1024 = vld [vmem:[#allocation7] sm:$0xff]
    %v1025 = vld [vmem:[#allocation7 + $0x8] sm:$0xff]
    %v1026 = vld [vmem:[#allocation7 + $0x10] sm:$0xff]
    %v1027 = vld [vmem:[#allocation7 + $0x18] sm:$0xff]
    %v1028 = vld [vmem:[#allocation7 + $0x20] sm:$0xff]
    %v1029 = vld [vmem:[#allocation7 + $0x28] sm:$0xff]
    %v1030 = vld [vmem:[#allocation7 + $0x30] sm:$0xff]
    %v1031 = vld [vmem:[#allocation7 + $0x38] sm:$0xff]
    %v1032 = vld [vmem:[#allocation7 + $0x40] sm:$0xff]
    %v1033 = vld [vmem:[#allocation7 + $0x48] sm:$0xff]
    %v1034 = vld [vmem:[#allocation7 + $0x50] sm:$0xff]
    %v1035 = vld [vmem:[#allocation7 + $0x58] sm:$0xff]
    %v1036 = vld [vmem:[#allocation7 + $0x60] sm:$0xff]
    %v1037 = vld [vmem:[#allocation7 + $0x68] sm:$0xff]
    %v1038 = vld [vmem:[#allocation7 + $0x70] sm:$0xff]
    %v1039 = vld [vmem:[#allocation7 + $0x78] sm:$0xff]
    %v1040 = vld [vmem:[#allocation7 + $0x80] sm:$0xff]
    %v1041 = vld [vmem:[#allocation7 + $0x88] sm:$0xff]
    %v1042 = vld [vmem:[#allocation7 + $0x90] sm:$0xff]
    %v1043 = vld [vmem:[#allocation7 + $0x98] sm:$0xff]
    %v1044 = vld [vmem:[#allocation7 + $0xa0] sm:$0xff]
    %v1045 = vld [vmem:[#allocation7 + $0xa8] sm:$0xff]
    %v1046 = vld [vmem:[#allocation7 + $0xb0] sm:$0xff]
    %v1047 = vld [vmem:[#allocation7 + $0xb8] sm:$0xff]
    %v1048 = vld [vmem:[#allocation7 + $0xc0] sm:$0xff]
    %v1049 = vld [vmem:[#allocation7 + $0xc8] sm:$0xff]
    %v1050 = vld [vmem:[#allocation7 + $0xd0] sm:$0xff]
    %v1051 = vld [vmem:[#allocation7 + $0xd8] sm:$0xff]
    %v1052 = vld [vmem:[#allocation7 + $0xe0] sm:$0xff]
    %v1053 = vld [vmem:[#allocation7 + $0xe8] sm:$0xff]
    %v1054 = vld [vmem:[#allocation7 + $0xf0] sm:$0xff]
    %v1055 = vld [vmem:[#allocation7 + $0xf8] sm:$0xff]
    %v1056 = vld [vmem:[#allocation7 + $0x100] sm:$0xff]
    %v1057 = vld [vmem:[#allocation7 + $0x108] sm:$0xff]
    %v1058 = vld [vmem:[#allocation7 + $0x110] sm:$0xff]
    %v1059 = vld [vmem:[#allocation7 + $0x118] sm:$0xff]
    %v1060 = vld [vmem:[#allocation7 + $0x120] sm:$0xff]
    %v1061 = vld [vmem:[#allocation7 + $0x128] sm:$0xff]
    %v1062 = vld [vmem:[#allocation7 + $0x130] sm:$0xff]
    %v1063 = vld [vmem:[#allocation7 + $0x138] sm:$0xff]
    %v1064 = vld [vmem:[#allocation7 + $0x140] sm:$0xff]
    %v1065 = vld [vmem:[#allocation7 + $0x148] sm:$0xff]
    %v1066 = vld [vmem:[#allocation7 + $0x150] sm:$0xff]
    %v1067 = vld [vmem:[#allocation7 + $0x158] sm:$0xff]
    %v1068 = vld [vmem:[#allocation7 + $0x160] sm:$0xff]
    %v1069 = vld [vmem:[#allocation7 + $0x168] sm:$0xff]
    %v1070 = vld [vmem:[#allocation7 + $0x170] sm:$0xff]
    %v1071 = vld [vmem:[#allocation7 + $0x178] sm:$0xff]
    %1072 = vmatpush.msra.mxu0 %v1039
    %1073 = vmatpush.msra.mxu0 %v1038
    %1074 = vmatpush.msra.mxu0 %v1037
    %1075 = vmatpush.msra.mxu0 %v1036
    %1076 = vmatpush.msra.mxu0 %v1035
    %1077 = vmatpush.msra.mxu0 %v1034
    %1078 = vmatpush.msra.mxu0 %v1033
    %1079 = vmatpush.msra.mxu0 %v1032
    %1080 = vmatpush.msra.mxu0 %v1031
    %1081 = vmatpush.msra.mxu0 %v1030
    %1082 = vmatpush.msra.mxu0 %v1029
    %1083 = vmatpush.msra.mxu0 %v1028
    %1084 = vmatpush.msra.mxu0 %v1027
    %1085 = vmatpush.msra.mxu0 %v1026
    %1086 = vmatpush.msra.mxu0 %v1025
    %1087 = vmatpush.msra.mxu0 %v1024
    %1088 = vmatmul.f32.gmra.mxu0 %v1018
    %v1089 = vpop.f32.mrf.mxu0
    %v1090 = vadd.f32 1.1920929e-07, %v1089
    %1091 = vmatmul.f32.gmra.mxu0 %v1021
    %v1092 = vpop.f32.mrf.mxu0
    %v1093 = vadd.f32 1.1920929e-07, %v1092
    %1094 = vdwg.mxu0
    %1095 = vmatpush.msra.mxu0 %v1055
    %1096 = vmatpush.msra.mxu0 %v1054
    %1097 = vmatpush.msra.mxu0 %v1053
    %1098 = vmatpush.msra.mxu0 %v1052
    %1099 = vmatpush.msra.mxu0 %v1051
    %1100 = vmatpush.msra.mxu0 %v1050
    %1101 = vmatpush.msra.mxu0 %v1049
    %1102 = vmatpush.msra.mxu0 %v1048
    %1103 = vmatpush.msra.mxu0 %v1047
    %1104 = vmatpush.msra.mxu0 %v1046
    %1105 = vmatpush.msra.mxu0 %v1045
    %1106 = vmatpush.msra.mxu0 %v1044
    %1107 = vmatpush.msra.mxu0 %v1043
    %1108 = vmatpush.msra.mxu0 %v1042
    %1109 = vmatpush.msra.mxu0 %v1041
    %1110 = vmatpush.msra.mxu0 %v1040
    %1111 = vmatmul.f32.gmra.mxu0 %v1019
    %v1112 = vpop.f32.mrf.mxu0
    %v1113 = vadd.f32 %v1090, %v1112
    %1114 = vmatmul.f32.gmra.mxu0 %v1022
    %v1115 = vpop.f32.mrf.mxu0
    %v1116 = vadd.f32 %v1093, %v1115
    %1117 = vdwg.mxu0
    %1118 = vmatpush.msra.mxu0 %v1071
    %1119 = vmatpush.msra.mxu0 %v1070
    %1120 = vmatpush.msra.mxu0 %v1069
    %1121 = vmatpush.msra.mxu0 %v1068
    %1122 = vmatpush.msra.mxu0 %v1067
    %1123 = vmatpush.msra.mxu0 %v1066
    %1124 = vmatpush.msra.mxu0 %v1065
    %1125 = vmatpush.msra.mxu0 %v1064
    %1126 = vmatpush.msra.mxu0 %v1063
    %1127 = vmatpush.msra.mxu0 %v1062
    %1128 = vmatpush.msra.mxu0 %v1061
    %1129 = vmatpush.msra.mxu0 %v1060
    %1130 = vmatpush.msra.mxu0 %v1059
    %1131 = vmatpush.msra.mxu0 %v1058
    %1132 = vmatpush.msra.mxu0 %v1057
    %1133 = vmatpush.msra.mxu0 %v1056
    %1134 = vmatmul.f32.gmra.mxu0 %v1020
    %v1135 = vpop.f32.mrf.mxu0
    %v1136 = vadd.f32 %v1113, %v1135
    %1137 = vmatmul.f32.gmra.mxu0 %v1023
    %v1138 = vpop.f32.mrf.mxu0
    %v1139 = vadd.f32 %v1116, %v1138
    %1140 = vdwg.mxu0
    %v1141 = vlog2.pop %v1136
    %v1142 = vmul.f32 %v1141, 0.6931472
    %v1143 = vlog2.pop %v1139
    %v1144 = vmul.f32 %v1143, 0.6931472
    %v1145 = vmul.f32 %v1142, 8.685889
    %v1146 = vmul.f32 %v1144, 8.685889
    %1147 = vst [vmem:[#allocation8] sm:$0xff] %v1145
    %1148 = vst [vmem:[#allocation8 + $0x8] sm:$0xff] %v1146
    // Predicated region
    $region26: #{tpu_custom_call.1} parent=1 // pred_check
      _
    $region27: #{tpu_custom_call.1} parent=1 // pred_check_branch
      %1150 = sbr.rel (0) target = $region29
    $region28: #{tpu_custom_call.1} parent=1 // pred_region
      %1152 = vsyncadd [#allocation4], 0
      %s1153 = sshll.u32 [#allocation8], 4
      %s1154 = int_to_ptr.vmem [resolvable:$true] %s1153
      %s1155 = sshll.u32 %s3, 4
      %s1156 = int_to_ptr.hbm [resolvable:$true] %s1155
      %1161 = dma.vmem_to_hbm [thread:$0]  %s1154, 256, %s1156, [#allocation4], 128, 128, 8
    $region29: #{tpu_custom_call.1} parent=1 // pred_fallthru
      _
    // Predicated region
    $region30: #{tpu_custom_call.1} parent=1 // pred_check
      _
    $region31: #{tpu_custom_call.1} parent=1 // pred_check_branch
      %1163 = sbr.rel (0) target = $region33
    $region32: #{tpu_custom_call.1} parent=1 // pred_region
      %1165 = dma.done [#allocation4], 256
    $region33: #{tpu_custom_call.1} parent=1 // pred_fallthru
      _
    %1166 = vsyncpa [#allocation3], 1
    %1167 = vsyncpa [#allocation6], 1
    %1168 = vsyncpa [#allocation4], 1

</llo_original>
